<compile_context>
chip_gen: v5e
topology: v5e:2x2
jax: 0.10.0
libtpu: 0.0.40
codegen_flags: <defaults>
</compile_context>

<pallas_src>
import functools

import jax
import jax.numpy as jnp
from jax.experimental import pallas as pl
from jax.experimental.pallas import tpu as pltpu


def _mlp_decoder_kernel(x_ref, w1_ref, b1_ref, g_ref, be_ref, w3_ref, b3_ref,
                        o_ref, *, neg_slope, eps):
    # ---- fc1: single MXU matmul, batch folded into M, bf16 in / f32 acc ----
    h = jnp.dot(x_ref[...], w1_ref[...], preferred_element_type=jnp.float32)
    h = h + b1_ref[...]                                  # (1, H) broadcast

    # ---- LeakyReLU(0.01), f32 on the VPU ----
    h = jnp.where(h > 0, h, neg_slope * h)

    # ---- BatchNorm1d, training-mode batch statistics (biased variance) ----
    # Activation is vreg-resident, so no VMEM reload between the two moments.
    inv_b = 1.0 / h.shape[0]
    mean = jnp.sum(h, axis=0, keepdims=True) * inv_b
    centered = h - mean
    var = jnp.sum(centered * centered, axis=0, keepdims=True) * inv_b
    hn = centered * jax.lax.rsqrt(var + eps)
    hn = hn * g_ref[...] + be_ref[...]

    # ---- fc3: 128 -> 1.  N=1 would underfill the MXU, so use VPU multiply
    #      + XLU lane reduction instead, all in f32. ----
    o_ref[...] = jnp.sum(hn * w3_ref[...], axis=-1, keepdims=True) + b3_ref[...]


def mlp_decoder_forward(x, params, *, neg_slope=0.01, eps=1e-5):
    """x: (B, in_dim).  Returns (B, 1).  BatchNorm in training mode (batch stats)."""
    w1, b1, gamma, beta, w3, b3 = params
    B, in_dim = x.shape
    H = w1.shape[0]                                      # 128

    kernel = functools.partial(_mlp_decoder_kernel, neg_slope=neg_slope, eps=eps)
    vmem = pl.BlockSpec(memory_space=pltpu.MemorySpace.VMEM)

    return pl.pallas_call(
        kernel,
        out_shape=jax.ShapeDtypeStruct((B, 1), jnp.float32),
        in_specs=[vmem] * 7,
        out_specs=vmem,
    )(
        x.astype(jnp.bfloat16),                          # MXU-native input
        jnp.transpose(w1).astype(jnp.bfloat16),          # (in_dim, H), bf16
        b1.reshape(1, H).astype(jnp.float32),
        gamma.reshape(1, H).astype(jnp.float32),
        beta.reshape(1, H).astype(jnp.float32),
        w3.reshape(1, H).astype(jnp.float32),            # fc3 weight as a row
        b3.reshape(1, 1).astype(jnp.float32),
    )


def init_mlp_decoder_params(key, in_dim, hidden=128):
    """Deterministic params matching nn.Linear / nn.BatchNorm1d default init."""
    k1, k2, k3, k4 = jax.random.split(key, 4)
    bound1 = 1.0 / jnp.sqrt(jnp.float32(in_dim))
    w1 = jax.random.uniform(k1, (hidden, in_dim), jnp.float32, -bound1, bound1)
    b1 = jax.random.uniform(k2, (hidden,), jnp.float32, -bound1, bound1)
    gamma = jnp.ones((hidden,), jnp.float32)
    beta = jnp.zeros((hidden,), jnp.float32)
    bound3 = 1.0 / jnp.sqrt(jnp.float32(hidden))
    w3 = jax.random.uniform(k3, (1, hidden), jnp.float32, -bound3, bound3)
    b3 = jax.random.uniform(k4, (1,), jnp.float32, -bound3, bound3)
    return (w1, b1, gamma, beta, w3, b3)


if __name__ == "__main__":
    key = jax.random.PRNGKey(0)
    k_in, k_par = jax.random.split(key)

    # Small shapes consistent with the module: batch=8, in_dim=64, hidden=128.
    B, in_dim = 8, 64
    x = jax.random.normal(k_in, (B, in_dim), jnp.float32)
    params = init_mlp_decoder_params(k_par, in_dim)

    out = mlp_decoder_forward(x, params)   # train_flag is unused by forward()
    out = jax.block_until_ready(out)

    assert out.shape == (B, 1)
    assert jnp.all(jnp.isfinite(out))
    print("KERNEL_OK")
</pallas_src>

<mosaic_0001>
module attributes {stable_mosaic.version = 11 : i64} {
  func.func @_mlp_decoder_kernel(%arg0: memref<8x64xbf16, #tpu.memory_space<vmem>>, %arg1: memref<64x128xbf16, #tpu.memory_space<vmem>>, %arg2: memref<1x128xf32, #tpu.memory_space<vmem>>, %arg3: memref<1x128xf32, #tpu.memory_space<vmem>>, %arg4: memref<1x128xf32, #tpu.memory_space<vmem>>, %arg5: memref<1x128xf32, #tpu.memory_space<vmem>>, %arg6: memref<1x1xf32, #tpu.memory_space<vmem>>, %arg7: memref<8x1xf32, #tpu.memory_space<vmem>>) attributes {dimension_semantics = [], scalar_prefetch = 0 : i64, scratch_operands = 0 : i64, tpu.core_type = #tpu.core_type<tc>} {
    %c0 = arith.constant 0 : index
    %c0_0 = arith.constant 0 : index
    %0 = vector.load %arg0[%c0, %c0_0] : memref<8x64xbf16, #tpu.memory_space<vmem>>, vector<8x64xbf16>
    %c0_1 = arith.constant 0 : index
    %c0_2 = arith.constant 0 : index
    %1 = vector.load %arg1[%c0_1, %c0_2] : memref<64x128xbf16, #tpu.memory_space<vmem>>, vector<64x128xbf16>
    %cst = arith.constant dense<0.000000e+00> : vector<8x128xf32>
    %2 = tpu.matmul %0, %1, %cst {dimension_numbers = #tpu.dot_dimension_numbers<[1], [0], [0], [1], [0, 0, 1, 1], [], []>} : vector<8x64xbf16>, vector<64x128xbf16>, vector<8x128xf32> -> vector<8x128xf32>
    %c0_3 = arith.constant 0 : index
    %c0_4 = arith.constant 0 : index
    %3 = vector.load %arg2[%c0_3, %c0_4] : memref<1x128xf32, #tpu.memory_space<vmem>>, vector<1x128xf32>
    %4 = vector.broadcast %3 : vector<1x128xf32> to vector<8x128xf32>
    %5 = arith.addf %2, %4 : vector<8x128xf32>
    %cst_5 = arith.constant 0.000000e+00 : f32
    %6 = vector.broadcast %cst_5 : f32 to vector<8x128xf32>
    %7 = arith.cmpf ogt, %5, %6 : vector<8x128xf32>
    %cst_6 = arith.constant 0.00999999977 : f32
    %8 = vector.broadcast %cst_6 : f32 to vector<8x128xf32>
    %9 = arith.mulf %8, %5 : vector<8x128xf32>
    %10 = arith.select %7, %5, %9 : vector<8x128xi1>, vector<8x128xf32>
    %cst_7 = arith.constant dense<0.000000e+00> : vector<128xf32>
    %11 = vector.multi_reduction <add>, %10, %cst_7 [0] : vector<8x128xf32> to vector<128xf32>
    %12 = vector.shape_cast %11 : vector<128xf32> to vector<1x128xf32>
    %cst_8 = arith.constant 1.250000e-01 : f32
    %13 = vector.broadcast %cst_8 : f32 to vector<1x128xf32>
    %14 = arith.mulf %12, %13 : vector<1x128xf32>
    %15 = vector.broadcast %14 : vector<1x128xf32> to vector<8x128xf32>
    %16 = arith.subf %10, %15 : vector<8x128xf32>
    %17 = arith.mulf %16, %16 : vector<8x128xf32>
    %cst_9 = arith.constant dense<0.000000e+00> : vector<128xf32>
    %18 = vector.multi_reduction <add>, %17, %cst_9 [0] : vector<8x128xf32> to vector<128xf32>
    %19 = vector.shape_cast %18 : vector<128xf32> to vector<1x128xf32>
    %cst_10 = arith.constant 1.250000e-01 : f32
    %20 = vector.broadcast %cst_10 : f32 to vector<1x128xf32>
    %21 = arith.mulf %19, %20 : vector<1x128xf32>
    %cst_11 = arith.constant 9.99999974E-6 : f32
    %22 = vector.broadcast %cst_11 : f32 to vector<1x128xf32>
    %23 = arith.addf %21, %22 : vector<1x128xf32>
    %24 = math.rsqrt %23 : vector<1x128xf32>
    %25 = vector.broadcast %24 : vector<1x128xf32> to vector<8x128xf32>
    %26 = arith.mulf %16, %25 : vector<8x128xf32>
    %c0_12 = arith.constant 0 : index
    %c0_13 = arith.constant 0 : index
    %27 = vector.load %arg3[%c0_12, %c0_13] : memref<1x128xf32, #tpu.memory_space<vmem>>, vector<1x128xf32>
    %28 = vector.broadcast %27 : vector<1x128xf32> to vector<8x128xf32>
    %29 = arith.mulf %26, %28 : vector<8x128xf32>
    %c0_14 = arith.constant 0 : index
    %c0_15 = arith.constant 0 : index
    %30 = vector.load %arg4[%c0_14, %c0_15] : memref<1x128xf32, #tpu.memory_space<vmem>>, vector<1x128xf32>
    %31 = vector.broadcast %30 : vector<1x128xf32> to vector<8x128xf32>
    %32 = arith.addf %29, %31 : vector<8x128xf32>
    %c0_16 = arith.constant 0 : index
    %c0_17 = arith.constant 0 : index
    %33 = vector.load %arg5[%c0_16, %c0_17] : memref<1x128xf32, #tpu.memory_space<vmem>>, vector<1x128xf32>
    %34 = vector.broadcast %33 : vector<1x128xf32> to vector<8x128xf32>
    %35 = arith.mulf %32, %34 : vector<8x128xf32>
    %cst_18 = arith.constant dense<0.000000e+00> : vector<8xf32>
    %36 = vector.multi_reduction <add>, %35, %cst_18 [1] : vector<8x128xf32> to vector<8xf32>
    %37 = vector.shape_cast %36 : vector<8xf32> to vector<8x1xf32>
    %c0_19 = arith.constant 0 : index
    %c0_20 = arith.constant 0 : index
    %38 = vector.load %arg6[%c0_19, %c0_20] : memref<1x1xf32, #tpu.memory_space<vmem>>, vector<1x1xf32>
    %39 = vector.broadcast %38 : vector<1x1xf32> to vector<8x1xf32>
    %40 = arith.addf %37, %39 : vector<8x1xf32>
    %c0_21 = arith.constant 0 : index
    %c0_22 = arith.constant 0 : index
    %41 = vector.load %arg7[%c0_21, %c0_22] : memref<8x1xf32, #tpu.memory_space<vmem>>, vector<8x1xf32>
    tpu.vector_store %arg7[%c0_21, %c0_22], %40 {strides = array<i32>} : memref<8x1xf32, #tpu.memory_space<vmem>>, vector<8x1xf32>,
    return
  }
}

</mosaic_0001>

<llo_original>
// kernel: tpu_custom_call.1
$region0: #{tpu_custom_call.1}
  #allocation0 [shape = 'u32[]', space=smem, size = 0x4, offset = 0x4, fixed_abs, tag = 'smem constant byte address 0x4 - core index']
  #allocation1 [shape = 'u32[72,128]{1,0:T(1,128)}', space=vmem, size = 0x9000, scoped, tag = 'internal scratch']
  #allocation2 [shape = 'f32[1,1]{1,0:T(1,128)S(1)}', space=vmem, size = 0x200, scoped, tag = 'scoped memory for tpu_custom_call.1']
  %s0 = inlined_call_operand.hbm [shape: bf16[8,64], index: 0, kind: input, shape index: {}]
  %s1 = inlined_call_operand.hbm [shape: bf16[64,128], index: 1, kind: input, shape index: {}]
  %s2 = inlined_call_operand.vmem [shape: f32[1,128], index: 2, kind: input, shape index: {}]
  %s3 = inlined_call_operand.vmem [shape: f32[1,128], index: 3, kind: input, shape index: {}]
  %s4 = inlined_call_operand.vmem [shape: f32[1,128], index: 4, kind: input, shape index: {}]
  %s5 = inlined_call_operand.vmem [shape: f32[1,128], index: 5, kind: input, shape index: {}]
  %s6 = inlined_call_operand.<no memory space> [shape: f32[1,1], index: 6, kind: input, shape index: {}]
  %s7 = inlined_call_operand.vmem [shape: f32[8,1], index: 7, kind: output, shape index: {}]
  %s8 = sld [smem:[#allocation0]]
  $region46: #{tpu_custom_call.1} parent=0
    _
  %s10 = ssub.s32 1, %s8
  %s11 = scalar_select 0, %s10, %s8
  %v12 = vstv %s6
  %13 = vst [vmem:[#allocation2] sm:$0x1] %v12
  $region1: #{tpu_custom_call.1} parent=0
    #allocation3 [shape = 'u8[2048]{0}', space=vmem, size = 0x800, scoped, tag = 'input window, operand 0, single buffered']
    #allocation4 [shape = 's32[1]{0}', space=sflag, size = 0x4, scoped, tag = 'scoped memory for tpu_custom_call.1']
    #allocation5 [shape = 'u8[16384]{0}', space=vmem, size = 0x4000, scoped, tag = 'input window, operand 1, single buffered']
    #allocation6 [shape = 's32[1]{0}', space=sflag, size = 0x4, scoped, tag = 'scoped memory for tpu_custom_call.1']
    %14 = vsyncpa [#allocation4], 0
    %15 = vsyncpa [#allocation6], 0
    // Predicated region
    $region2: #{tpu_custom_call.1} parent=1 // pred_check
      _
    $region3: #{tpu_custom_call.1} parent=1 // pred_check_branch
      %17 = sbr.rel (0) target = $region5
    $region4: #{tpu_custom_call.1} parent=1 // pred_region
      %19 = vsyncadd [#allocation4], 0
      %s21 = sshll.u32 %s0, 4
      %s22 = int_to_ptr.hbm [resolvable:$true] %s21
      %s23 = sshll.u32 [#allocation3], 4
      %s24 = int_to_ptr.vmem [resolvable:$true] %s23
      %26 = dma.hbm_to_vmem [thread:$0]  %s22, 64, %s24, [#allocation4]
    $region5: #{tpu_custom_call.1} parent=1 // pred_fallthru
      _
    // Predicated region
    $region6: #{tpu_custom_call.1} parent=1 // pred_check
      _
    $region7: #{tpu_custom_call.1} parent=1 // pred_check_branch
      %28 = sbr.rel (0) target = $region9
    $region8: #{tpu_custom_call.1} parent=1 // pred_region
      %30 = vsyncadd [#allocation6], 0
      %s31 = sshll.u32 %s1, 4
      %s32 = int_to_ptr.hbm [resolvable:$true] %s31
      %s33 = sshll.u32 [#allocation5], 4
      %s34 = int_to_ptr.vmem [resolvable:$true] %s33
      %39 = dma.hbm_to_vmem [thread:$0]  %s32, 512, %s34, [#allocation6], 64, 64, 4
    $region9: #{tpu_custom_call.1} parent=1 // pred_fallthru
      _
    // Predicated region
    $region10: #{tpu_custom_call.1} parent=1 // pred_check
      _
    $region11: #{tpu_custom_call.1} parent=1 // pred_check_branch
      %41 = sbr.rel (0) target = $region13
    $region12: #{tpu_custom_call.1} parent=1 // pred_region
      _
    $region13: #{tpu_custom_call.1} parent=1 // pred_fallthru
      _
    // Predicated region
    $region14: #{tpu_custom_call.1} parent=1 // pred_check
      _
    $region15: #{tpu_custom_call.1} parent=1 // pred_check_branch
      %43 = sbr.rel (0) target = $region17
    $region16: #{tpu_custom_call.1} parent=1 // pred_region
      _
    $region17: #{tpu_custom_call.1} parent=1 // pred_fallthru
      _
    // Predicated region
    $region18: #{tpu_custom_call.1} parent=1 // pred_check
      _
    $region19: #{tpu_custom_call.1} parent=1 // pred_check_branch
      %45 = sbr.rel (0) target = $region21
    $region20: #{tpu_custom_call.1} parent=1 // pred_region
      _
    $region21: #{tpu_custom_call.1} parent=1 // pred_fallthru
      _
    // Predicated region
    $region22: #{tpu_custom_call.1} parent=1 // pred_check
      _
    $region23: #{tpu_custom_call.1} parent=1 // pred_check_branch
      %47 = sbr.rel (0) target = $region25
    $region24: #{tpu_custom_call.1} parent=1 // pred_region
      _
    $region25: #{tpu_custom_call.1} parent=1 // pred_fallthru
      _
    // Predicated region
    $region26: #{tpu_custom_call.1} parent=1 // pred_check
      _
    $region27: #{tpu_custom_call.1} parent=1 // pred_check_branch
      %49 = sbr.rel (0) target = $region29
    $region28: #{tpu_custom_call.1} parent=1 // pred_region
      _
    $region29: #{tpu_custom_call.1} parent=1 // pred_fallthru
      _
    // Predicated region
    $region30: #{tpu_custom_call.1} parent=1 // pred_check
      _
    $region31: #{tpu_custom_call.1} parent=1 // pred_check_branch
      %51 = sbr.rel (0) target = $region33
    $region32: #{tpu_custom_call.1} parent=1 // pred_region
      %53 = dma.done [#allocation4], 64
    $region33: #{tpu_custom_call.1} parent=1 // pred_fallthru
      _
    // Predicated region
    $region34: #{tpu_custom_call.1} parent=1 // pred_check
      _
    $region35: #{tpu_custom_call.1} parent=1 // pred_check_branch
      %55 = sbr.rel (0) target = $region37
    $region36: #{tpu_custom_call.1} parent=1 // pred_region
      %57 = dma.done [#allocation6], 512
    $region37: #{tpu_custom_call.1} parent=1 // pred_fallthru
      _
    %v59 = vld [vmem:[#allocation3] sm:$0xf]
    %v60 = vld [vmem:[#allocation5] sm:$0xf]
    %v61 = vld [vmem:[#allocation5 + $0x4] sm:$0xf]
    %v62 = vld [vmem:[#allocation5 + $0x8] sm:$0xf]
    %v63 = vld [vmem:[#allocation5 + $0xc] sm:$0xf]
    %v64 = vld [vmem:[#allocation5 + $0x10] sm:$0xf]
    %v65 = vld [vmem:[#allocation5 + $0x14] sm:$0xf]
    %v66 = vld [vmem:[#allocation5 + $0x18] sm:$0xf]
    %v67 = vld [vmem:[#allocation5 + $0x1c] sm:$0xf]
    %v68 = vld [vmem:[%s2] sm:$0x1]
    %v70 = vperm.slane %v68, 0
    %v80 = vunpack.c.l.b16 %v60
    %v81 = vunpack.c.l.b16 %v61
    %v82 = vunpack.c.l.b16 %v62
    %v83 = vunpack.c.l.b16 %v63
    %v84 = vunpack.c.l.b16 %v64
    %v85 = vunpack.c.l.b16 %v65
    %v86 = vunpack.c.l.b16 %v66
    %v87 = vunpack.c.l.b16 %v67
    %v88 = vpack.c.b16 %v81, %v80
    %v89 = vpack.c.b16 %v83, %v82
    %v90 = vpack.c.b16 %v85, %v84
    %v91 = vpack.c.b16 %v87, %v86
    %vm96 = vcmask 523264
    %v98 = vsel %vm96, %v59, 0
    %100 = vmatpush.bf16.msra.mxu0 0
    %101 = vmatpush.bf16.msra.mxu0 0
    %102 = vmatpush.bf16.msra.mxu0 0
    %103 = vmatpush.bf16.msra.mxu0 0
    %104 = vmatpush.bf16.msra.mxu0 %v91
    %105 = vmatpush.bf16.msra.mxu0 %v90
    %106 = vmatpush.bf16.msra.mxu0 %v89
    %107 = vmatpush.bf16.msra.mxu0 %v88
    %108 = vmatmul.bf16.gmra.mxu0 %v98
    %v109 = vpop.f32.mrf.mxu0
    %v110 = vadd.f32 %v70, %v109
    %v111 = vpop.f32.mrf.mxu0
    %112 = vdwg.mxu0
    %vm113 = vcmp.gt.f32.partialorder %v110, 0.0
    %v114 = vmul.f32 %v110, 0.01
    %v115 = vsel %vm113, %v110, %v114
    %v116 = vrot.slane %v115, 4
    %v117 = vadd.f32 %v115, %v116
    %v118 = vrot.slane %v117, 2
    %v119 = vadd.f32 %v117, %v118
    %v120 = vrot.slane %v119, 1
    %v121 = vadd.f32 %v119, %v120
    %v122 = vmul.f32 %v121, 0.125
    %v123 = vsub.f32 %v115, %v122
    %v124 = vmul.f32 %v123, %v123
    %v125 = vrot.slane %v124, 4
    %v126 = vadd.f32 %v124, %v125
    %v127 = vrot.slane %v126, 2
    %v128 = vadd.f32 %v126, %v127
    %v129 = vrot.slane %v128, 1
    %v130 = vadd.f32 %v128, %v129
    %v131 = vmul.f32 %v130, 0.125
    %v132 = vadd.f32 %v131, 1e-05
    %v133 = vrsqrt.pop %v132
    %v134 = vmul.f32 %v133, %v132
    %v135 = vmul.f32 %v134, %v133
    %v136 = vmul.f32 0.5, %v135
    %v137 = vsub.f32 1.5, %v136
    %v138 = vmul.f32 %v133, %v137
    %vm139 = vweird.f32 %v132
    %vm140 = vweird.f32 %v133
    %vm141 = vmor %vm139, %vm140
    %v142 = vsel %vm141, %v133, %v138
    %v143 = vmul.f32 %v123, %v142
    %v144 = vld [vmem:[%s3] sm:$0x1]
    %v146 = vperm.slane %v144, 0
    %v148 = vmul.f32 %v143, %v146
    %v149 = vld [vmem:[%s4] sm:$0x1]
    %v151 = vperm.slane %v149, 0
    %v153 = vadd.f32 %v148, %v151
    %v154 = vld [vmem:[%s5] sm:$0x1]
    %v156 = vperm.slane %v154, 0
    %v158 = vmul.f32 %v153, %v156
    %159 = vadd.xlane.f32.xlu0 %v158
    %v160 = vpop.xlane.xlu0 %159
    %v161 = vld [vmem:[#allocation2] sm:$0x1]
    %v163 = vperm.slane %v161, 0
    %v165 = vadd.f32 %v160, %v163
    %vm166 = vcmask 7168
    %167 = vst.msk [vmem:[%s7] sm:$0xff] %vm166, %v165
    // Predicated region
    $region38: #{tpu_custom_call.1} parent=1 // pred_check
      _
    $region39: #{tpu_custom_call.1} parent=1 // pred_check_branch
      %169 = sbr.rel (0) target = $region41
    $region40: #{tpu_custom_call.1} parent=1 // pred_region
      _
    $region41: #{tpu_custom_call.1} parent=1 // pred_fallthru
      _
    // Predicated region
    $region42: #{tpu_custom_call.1} parent=1 // pred_check
      _
    $region43: #{tpu_custom_call.1} parent=1 // pred_check_branch
      %171 = sbr.rel (0) target = $region45
    $region44: #{tpu_custom_call.1} parent=1 // pred_region
      _
    $region45: #{tpu_custom_call.1} parent=1 // pred_fallthru
      _
    %172 = vsyncpa [#allocation4], 1
    %173 = vsyncpa [#allocation6], 1

</llo_original>
